<compile_context>
chip_gen: v7x
topology: tpu7x:2x2x1
jax: 0.10.0
libtpu: 0.0.40
codegen_flags: <defaults>
</compile_context>

<pallas_src>
import functools
import math

import jax
import jax.numpy as jnp
from jax.experimental import pallas as pl
from jax.experimental.pallas import tpu as pltpu

_LANE = 128        # TPU lane width
_R = 8             # sublane rows used per sample (fills the 8-sublane vreg)
_TN_TARGET = 4096  # lane-tile width target (amortizes ~0.35us per grid step)


def _round_up(x, m):
    return -(-x // m) * m


def _bce_dice_partial_kernel(p_ref, t_ref, out_ref,
                             acc_bce, acc_int, acc_p, acc_t,
                             *, lane_chunks):
    """Grid = (B, n_tiles).  Block = one sample's (8, TN) slice of lanes.

    Accumulates lane-wide (8,128) partial sums across the 'arbitrary' tile
    axis and flushes them to the per-sample output block at the last tile.
    """
    j = pl.program_id(1)

    @pl.when(j == 0)
    def _init():
        acc_bce[...] = jnp.zeros_like(acc_bce)
        acc_int[...] = jnp.zeros_like(acc_int)
        acc_p[...] = jnp.zeros_like(acc_p)
        acc_t[...] = jnp.zeros_like(acc_t)

    p = p_ref[...].astype(jnp.float32)   # (8, TN)
    t = t_ref[...].astype(jnp.float32)   # (8, TN)

    # BCE elementwise term, log clamped at -100 exactly like torch.nn.BCELoss.
    # (General two-log form so soft / non-binary targets stay exact.)
    log_p = jnp.maximum(jnp.log(p), -100.0)
    log_1mp = jnp.maximum(jnp.log(1.0 - p), -100.0)
    bce = -(t * log_p + (1.0 - t) * log_1mp)
    inter = p * t

    def lane_fold(x):
        # (8, TN) -> (8, 128): pairwise-tree VPU adds of 128-lane chunks.
        # Every slice lands on a vreg boundary so it is free; no XLU reduce.
        chunks = [x[:, c * _LANE:(c + 1) * _LANE] for c in range(lane_chunks)]
        while len(chunks) > 1:
            nxt = [chunks[k] + chunks[k + 1] for k in range(0, len(chunks) - 1, 2)]
            if len(chunks) % 2:
                nxt.append(chunks[-1])
            chunks = nxt
        return chunks[0]

    acc_bce[...] += lane_fold(bce)
    acc_int[...] += lane_fold(inter)
    acc_p[...] += lane_fold(p)
    acc_t[...] += lane_fold(t)

    @pl.when(j == pl.num_programs(1) - 1)
    def _finalize():
        out_ref[0, :, :] = acc_bce[...]
        out_ref[1, :, :] = acc_int[...]
        out_ref[2, :, :] = acc_p[...]
        out_ref[3, :, :] = acc_t[...]


@functools.partial(jax.jit, static_argnames=("wb", "wd"))
def bce_dice_loss(pred, target, wb=1.0, wd=1.0):
    """pred, target: N x ... arrays; pred values in (0, 1)."""
    B = pred.shape[0]
    N = int(math.prod(pred.shape[1:]))

    # ---- layout: flatten, split each sample into R=8 rows, pad lanes ----
    m_raw = -(-N // _R)                        # ceil(N / R)
    m_aligned = _round_up(max(m_raw, 1), _LANE)
    TN = min(_TN_TARGET, m_aligned)            # lane-tile width (multiple of 128)
    n_tiles = -(-m_aligned // TN)
    m_pad = n_tiles * TN
    n_pad = _R * m_pad

    pred2 = pred.reshape(B, N)
    target2 = target.reshape(B, N)
    pad = n_pad - N
    if pad:
        # zero padding contributes exactly 0 to the BCE sum and to all dice sums
        pred2 = jnp.pad(pred2, ((0, 0), (0, pad)))
        target2 = jnp.pad(target2, ((0, 0), (0, pad)))
    pred_r = pred2.reshape(B * _R, m_pad)
    target_r = target2.reshape(B * _R, m_pad)

    kernel = functools.partial(_bce_dice_partial_kernel,
                               lane_chunks=TN // _LANE)

    # Per-sample lane-dense partials: [bce_sum, intersection, pred_sum, target_sum]
    partial = pl.pallas_call(
        kernel,
        out_shape=jax.ShapeDtypeStruct((B, 4, _R, _LANE), jnp.float32),
        grid=(B, n_tiles),
        in_specs=[
            pl.BlockSpec((_R, TN), lambda i, j: (i, j)),
            pl.BlockSpec((_R, TN), lambda i, j: (i, j)),
        ],
        out_specs=pl.BlockSpec((None, 4, _R, _LANE), lambda i, j: (i, 0, 0, 0)),
        scratch_shapes=[pltpu.VMEM((_R, _LANE), jnp.float32)] * 4,
        compiler_params=pltpu.CompilerParams(
            dimension_semantics=("parallel", "arbitrary")),
    )(pred_r, target_r)

    # ---- tiny scalar combine (once, outside the kernel) ----
    sums = jnp.sum(partial, axis=(2, 3))            # (B, 4)
    bce_loss = jnp.sum(sums[:, 0]) / jnp.float32(B * N)
    smooth = jnp.float32(1.0)
    dice_score = (2.0 * sums[:, 1] + smooth) / (sums[:, 2] + sums[:, 3] + smooth)
    dice_loss = 1.0 - jnp.sum(dice_score) / jnp.float32(B)
    return jnp.float32(wd) * dice_loss + jnp.float32(wb) * bce_loss


def _reference(pred, target, wb=1.0, wd=1.0):
    B = pred.shape[0]
    p2 = pred.reshape(B, -1).astype(jnp.float32)
    t2 = target.reshape(B, -1).astype(jnp.float32)
    bce = jnp.mean(-(t2 * jnp.maximum(jnp.log(p2), -100.0)
                     + (1.0 - t2) * jnp.maximum(jnp.log(1.0 - p2), -100.0)))
    inter = jnp.sum(p2 * t2, axis=1)
    dice = 1.0 - jnp.mean((2.0 * inter + 1.0)
                          / (jnp.sum(p2, axis=1) + jnp.sum(t2, axis=1) + 1.0))
    return wd * dice + wb * bce


if __name__ == "__main__":
    key = jax.random.PRNGKey(0)
    k1, k2, k3, k4 = jax.random.split(key, 4)

    # main case: B=2, C=4, 16x16 (N = 1024, no-padding path)
    B, C, H, W = 2, 4, 16, 16
    pred = jax.nn.sigmoid(jax.random.normal(k1, (B, C, H, W), dtype=jnp.float32))
    target = (jax.random.uniform(k2, (B, C, H, W), dtype=jnp.float32) > 0.5
              ).astype(jnp.float32)

    loss = bce_dice_loss(pred, target, wb=1.0, wd=1.0)
    jax.block_until_ready(loss)
    ref = _reference(pred, target, wb=1.0, wd=1.0)
    assert jnp.allclose(loss, ref, rtol=1e-4, atol=1e-5), (loss, ref)

    # odd-shaped case: exercises the zero-padding path (N = 765)
    B2, C2, H2, W2 = 2, 3, 15, 17
    pred_o = jax.nn.sigmoid(jax.random.normal(k3, (B2, C2, H2, W2), dtype=jnp.float32))
    target_o = (jax.random.uniform(k4, (B2, C2, H2, W2), dtype=jnp.float32) > 0.5
                ).astype(jnp.float32)
    loss_o = bce_dice_loss(pred_o, target_o, wb=0.7, wd=1.3)
    jax.block_until_ready(loss_o)
    ref_o = _reference(pred_o, target_o, wb=0.7, wd=1.3)
    assert jnp.allclose(loss_o, ref_o, rtol=1e-4, atol=1e-5), (loss_o, ref_o)

    print("KERNEL_OK")
</pallas_src>

<mosaic_0001>
module attributes {stable_mosaic.version = 11 : i64} {
  func.func @_bce_dice_partial_kernel(%arg0: i32, %arg1: i32, %arg2: memref<8x128xf32, #tpu.memory_space<vmem>>, %arg3: memref<8x128xf32, #tpu.memory_space<vmem>>, %arg4: memref<1x4x8x128xf32, #tpu.memory_space<vmem>>, %arg5: memref<8x128xf32, #tpu.memory_space<vmem>>, %arg6: memref<8x128xf32, #tpu.memory_space<vmem>>, %arg7: memref<8x128xf32, #tpu.memory_space<vmem>>, %arg8: memref<8x128xf32, #tpu.memory_space<vmem>>) attributes {dimension_semantics = [#tpu.dimension_semantics<parallel>, #tpu.dimension_semantics<arbitrary>], iteration_bounds = array<i64: 2, 1>, scalar_prefetch = 0 : i64, scratch_operands = 4 : i64, tpu.core_type = #tpu.core_type<tc>, window_params = [{transform_indices = @transform_0, window_bounds = array<i64: 8, 128>}, {transform_indices = @transform_1, window_bounds = array<i64: 8, 128>}, {transform_indices = @transform_2, window_bounds = array<i64: 1, 4, 8, 128>}]} {
    %c0_i32 = arith.constant 0 : i32
    %0 = arith.cmpi eq, %arg1, %c0_i32 : i32
    %1 = arith.extui %0 : i1 to i32
    %c0_i32_0 = arith.constant 0 : i32
    %2 = arith.cmpi ne, %1, %c0_i32_0 : i32
    scf.if %2 {
      %cst_26 = arith.constant 0.000000e+00 : f32
      %36 = vector.broadcast %cst_26 : f32 to vector<8x128xf32>
      %c0_27 = arith.constant 0 : index
      %c0_28 = arith.constant 0 : index
      %37 = vector.load %arg5[%c0_27, %c0_28] : memref<8x128xf32, #tpu.memory_space<vmem>>, vector<8x128xf32>
      tpu.vector_store %arg5[%c0_27, %c0_28], %36 {strides = array<i32>} : memref<8x128xf32, #tpu.memory_space<vmem>>, vector<8x128xf32>,
      %cst_29 = arith.constant 0.000000e+00 : f32
      %38 = vector.broadcast %cst_29 : f32 to vector<8x128xf32>
      %c0_30 = arith.constant 0 : index
      %c0_31 = arith.constant 0 : index
      %39 = vector.load %arg6[%c0_30, %c0_31] : memref<8x128xf32, #tpu.memory_space<vmem>>, vector<8x128xf32>
      tpu.vector_store %arg6[%c0_30, %c0_31], %38 {strides = array<i32>} : memref<8x128xf32, #tpu.memory_space<vmem>>, vector<8x128xf32>,
      %cst_32 = arith.constant 0.000000e+00 : f32
      %40 = vector.broadcast %cst_32 : f32 to vector<8x128xf32>
      %c0_33 = arith.constant 0 : index
      %c0_34 = arith.constant 0 : index
      %41 = vector.load %arg7[%c0_33, %c0_34] : memref<8x128xf32, #tpu.memory_space<vmem>>, vector<8x128xf32>
      tpu.vector_store %arg7[%c0_33, %c0_34], %40 {strides = array<i32>} : memref<8x128xf32, #tpu.memory_space<vmem>>, vector<8x128xf32>,
      %cst_35 = arith.constant 0.000000e+00 : f32
      %42 = vector.broadcast %cst_35 : f32 to vector<8x128xf32>
      %c0_36 = arith.constant 0 : index
      %c0_37 = arith.constant 0 : index
      %43 = vector.load %arg8[%c0_36, %c0_37] : memref<8x128xf32, #tpu.memory_space<vmem>>, vector<8x128xf32>
      tpu.vector_store %arg8[%c0_36, %c0_37], %42 {strides = array<i32>} : memref<8x128xf32, #tpu.memory_space<vmem>>, vector<8x128xf32>,
    } else {
    }
    %c0 = arith.constant 0 : index
    %c0_1 = arith.constant 0 : index
    %3 = vector.load %arg2[%c0, %c0_1] : memref<8x128xf32, #tpu.memory_space<vmem>>, vector<8x128xf32>
    %c0_2 = arith.constant 0 : index
    %c0_3 = arith.constant 0 : index
    %4 = vector.load %arg3[%c0_2, %c0_3] : memref<8x128xf32, #tpu.memory_space<vmem>>, vector<8x128xf32>
    %5 = math.log %3 : vector<8x128xf32>
    %cst = arith.constant -1.000000e+02 : f32
    %6 = vector.broadcast %cst : f32 to vector<8x128xf32>
    %7 = arith.maximumf %5, %6 : vector<8x128xf32>
    %cst_4 = arith.constant 1.000000e+00 : f32
    %8 = vector.broadcast %cst_4 : f32 to vector<8x128xf32>
    %9 = arith.subf %8, %3 : vector<8x128xf32>
    %10 = math.log %9 : vector<8x128xf32>
    %cst_5 = arith.constant -1.000000e+02 : f32
    %11 = vector.broadcast %cst_5 : f32 to vector<8x128xf32>
    %12 = arith.maximumf %10, %11 : vector<8x128xf32>
    %13 = arith.mulf %4, %7 : vector<8x128xf32>
    %cst_6 = arith.constant 1.000000e+00 : f32
    %14 = vector.broadcast %cst_6 : f32 to vector<8x128xf32>
    %15 = arith.subf %14, %4 : vector<8x128xf32>
    %16 = arith.mulf %15, %12 : vector<8x128xf32>
    %17 = arith.addf %13, %16 : vector<8x128xf32>
    %cst_7 = arith.constant 0.000000e+00 : f32
    %18 = vector.broadcast %cst_7 : f32 to vector<8x128xf32>
    %19 = arith.subf %18, %17 : vector<8x128xf32>
    %20 = arith.mulf %3, %4 : vector<8x128xf32>
    %c0_8 = arith.constant 0 : index
    %c0_9 = arith.constant 0 : index
    %21 = vector.load %arg5[%c0_8, %c0_9] : memref<8x128xf32, #tpu.memory_space<vmem>>, vector<8x128xf32>
    %22 = arith.addf %21, %19 : vector<8x128xf32>
    %c0_10 = arith.constant 0 : index
    %c0_11 = arith.constant 0 : index
    %23 = vector.load %arg5[%c0_10, %c0_11] : memref<8x128xf32, #tpu.memory_space<vmem>>, vector<8x128xf32>
    tpu.vector_store %arg5[%c0_10, %c0_11], %22 {strides = array<i32>} : memref<8x128xf32, #tpu.memory_space<vmem>>, vector<8x128xf32>,
    %c0_12 = arith.constant 0 : index
    %c0_13 = arith.constant 0 : index
    %24 = vector.load %arg6[%c0_12, %c0_13] : memref<8x128xf32, #tpu.memory_space<vmem>>, vector<8x128xf32>
    %25 = arith.addf %24, %20 : vector<8x128xf32>
    %c0_14 = arith.constant 0 : index
    %c0_15 = arith.constant 0 : index
    %26 = vector.load %arg6[%c0_14, %c0_15] : memref<8x128xf32, #tpu.memory_space<vmem>>, vector<8x128xf32>
    tpu.vector_store %arg6[%c0_14, %c0_15], %25 {strides = array<i32>} : memref<8x128xf32, #tpu.memory_space<vmem>>, vector<8x128xf32>,
    %c0_16 = arith.constant 0 : index
    %c0_17 = arith.constant 0 : index
    %27 = vector.load %arg7[%c0_16, %c0_17] : memref<8x128xf32, #tpu.memory_space<vmem>>, vector<8x128xf32>
    %28 = arith.addf %27, %3 : vector<8x128xf32>
    %c0_18 = arith.constant 0 : index
    %c0_19 = arith.constant 0 : index
    %29 = vector.load %arg7[%c0_18, %c0_19] : memref<8x128xf32, #tpu.memory_space<vmem>>, vector<8x128xf32>
    tpu.vector_store %arg7[%c0_18, %c0_19], %28 {strides = array<i32>} : memref<8x128xf32, #tpu.memory_space<vmem>>, vector<8x128xf32>,
    %c0_20 = arith.constant 0 : index
    %c0_21 = arith.constant 0 : index
    %30 = vector.load %arg8[%c0_20, %c0_21] : memref<8x128xf32, #tpu.memory_space<vmem>>, vector<8x128xf32>
    %31 = arith.addf %30, %4 : vector<8x128xf32>
    %c0_22 = arith.constant 0 : index
    %c0_23 = arith.constant 0 : index
    %32 = vector.load %arg8[%c0_22, %c0_23] : memref<8x128xf32, #tpu.memory_space<vmem>>, vector<8x128xf32>
    tpu.vector_store %arg8[%c0_22, %c0_23], %31 {strides = array<i32>} : memref<8x128xf32, #tpu.memory_space<vmem>>, vector<8x128xf32>,
    %c0_i32_24 = arith.constant 0 : i32
    %33 = arith.cmpi eq, %arg1, %c0_i32_24 : i32
    %34 = arith.extui %33 : i1 to i32
    %c0_i32_25 = arith.constant 0 : i32
    %35 = arith.cmpi ne, %34, %c0_i32_25 : i32
    scf.if %35 {
      %c0_26 = arith.constant 0 : index
      %c0_27 = arith.constant 0 : index
      %36 = vector.load %arg5[%c0_26, %c0_27] : memref<8x128xf32, #tpu.memory_space<vmem>>, vector<8x128xf32>
      %c0_28 = arith.constant 0 : index
      %c0_29 = arith.constant 0 : index
      %c0_30 = arith.constant 0 : index
      %c0_31 = arith.constant 0 : index
      %37 = vector.load %arg4[%c0_28, %c0_29, %c0_30, %c0_31] : memref<1x4x8x128xf32, #tpu.memory_space<vmem>>, vector<1x1x8x128xf32>
      %38 = vector.shape_cast %37 : vector<1x1x8x128xf32> to vector<8x128xf32>
      %39 = vector.shape_cast %36 : vector<8x128xf32> to vector<1x1x8x128xf32>
      tpu.vector_store %arg4[%c0_28, %c0_29, %c0_30, %c0_31], %39 {strides = array<i32>} : memref<1x4x8x128xf32, #tpu.memory_space<vmem>>, vector<1x1x8x128xf32>,
      %c0_32 = arith.constant 0 : index
      %c0_33 = arith.constant 0 : index
      %40 = vector.load %arg6[%c0_32, %c0_33] : memref<8x128xf32, #tpu.memory_space<vmem>>, vector<8x128xf32>
      %c0_34 = arith.constant 0 : index
      %c1 = arith.constant 1 : index
      %c0_35 = arith.constant 0 : index
      %c0_36 = arith.constant 0 : index
      %41 = vector.load %arg4[%c0_34, %c1, %c0_35, %c0_36] : memref<1x4x8x128xf32, #tpu.memory_space<vmem>>, vector<1x1x8x128xf32>
      %42 = vector.shape_cast %41 : vector<1x1x8x128xf32> to vector<8x128xf32>
      %43 = vector.shape_cast %40 : vector<8x128xf32> to vector<1x1x8x128xf32>
      tpu.vector_store %arg4[%c0_34, %c1, %c0_35, %c0_36], %43 {strides = array<i32>} : memref<1x4x8x128xf32, #tpu.memory_space<vmem>>, vector<1x1x8x128xf32>,
      %c0_37 = arith.constant 0 : index
      %c0_38 = arith.constant 0 : index
      %44 = vector.load %arg7[%c0_37, %c0_38] : memref<8x128xf32, #tpu.memory_space<vmem>>, vector<8x128xf32>
      %c0_39 = arith.constant 0 : index
      %c2 = arith.constant 2 : index
      %c0_40 = arith.constant 0 : index
      %c0_41 = arith.constant 0 : index
      %45 = vector.load %arg4[%c0_39, %c2, %c0_40, %c0_41] : memref<1x4x8x128xf32, #tpu.memory_space<vmem>>, vector<1x1x8x128xf32>
      %46 = vector.shape_cast %45 : vector<1x1x8x128xf32> to vector<8x128xf32>
      %47 = vector.shape_cast %44 : vector<8x128xf32> to vector<1x1x8x128xf32>
      tpu.vector_store %arg4[%c0_39, %c2, %c0_40, %c0_41], %47 {strides = array<i32>} : memref<1x4x8x128xf32, #tpu.memory_space<vmem>>, vector<1x1x8x128xf32>,
      %c0_42 = arith.constant 0 : index
      %c0_43 = arith.constant 0 : index
      %48 = vector.load %arg8[%c0_42, %c0_43] : memref<8x128xf32, #tpu.memory_space<vmem>>, vector<8x128xf32>
      %c0_44 = arith.constant 0 : index
      %c3 = arith.constant 3 : index
      %c0_45 = arith.constant 0 : index
      %c0_46 = arith.constant 0 : index
      %49 = vector.load %arg4[%c0_44, %c3, %c0_45, %c0_46] : memref<1x4x8x128xf32, #tpu.memory_space<vmem>>, vector<1x1x8x128xf32>
      %50 = vector.shape_cast %49 : vector<1x1x8x128xf32> to vector<8x128xf32>
      %51 = vector.shape_cast %48 : vector<8x128xf32> to vector<1x1x8x128xf32>
      tpu.vector_store %arg4[%c0_44, %c3, %c0_45, %c0_46], %51 {strides = array<i32>} : memref<1x4x8x128xf32, #tpu.memory_space<vmem>>, vector<1x1x8x128xf32>,
    } else {
    }
    return
  }
  func.func @transform_0(%arg0: i32, %arg1: i32) -> (i32, i32) {
    %c0_i32 = arith.constant 0 : i32
    return %arg0, %arg1 : i32, i32
  }
  func.func @transform_1(%arg0: i32, %arg1: i32) -> (i32, i32) {
    %c0_i32 = arith.constant 0 : i32
    return %arg0, %arg1 : i32, i32
  }
  func.func @transform_2(%arg0: i32, %arg1: i32) -> (i32, i32, i32, i32) {
    %c0_i32 = arith.constant 0 : i32
    %c0_i32_0 = arith.constant 0 : i32
    %c0_i32_1 = arith.constant 0 : i32
    %c0_i32_2 = arith.constant 0 : i32
    return %arg0, %c0_i32, %c0_i32_0, %c0_i32_1 : i32, i32, i32, i32
  }
}

</mosaic_0001>

<llo_original>
// kernel: bce_dice_loss.1
$region0: #{bce_dice_loss.1}
  #allocation0 [shape = 'u32[]', space=smem, size = 0x4, offset = 0x4, fixed_abs, tag = 'smem constant byte address 0x4 - core index']
  #allocation1 [shape = 'u32[144,128]{1,0:T(1,128)}', space=vmem, size = 0x12000, scoped, tag = 'internal scratch']
  #allocation2 [shape = 'f32[8,128]{1,0:T(8,128)}', space=vmem, size = 0x1000, scoped, tag = 'scratch operand']
  #allocation3 [shape = 'f32[8,128]{1,0:T(8,128)}', space=vmem, size = 0x1000, scoped, tag = 'scratch operand']
  #allocation4 [shape = 'f32[8,128]{1,0:T(8,128)}', space=vmem, size = 0x1000, scoped, tag = 'scratch operand']
  #allocation5 [shape = 'f32[8,128]{1,0:T(8,128)}', space=vmem, size = 0x1000, scoped, tag = 'scratch operand']
  %s0 = inlined_call_operand.vmem [shape: f32[16,128], index: 0, kind: input, shape index: {}]
  %s1 = inlined_call_operand.vmem [shape: f32[16,128], index: 1, kind: input, shape index: {}]
  %s2 = inlined_call_operand.vmem [shape: f32[2,4,8,128], index: 2, kind: output, shape index: {}]
  %s3 = sld [smem:[#allocation0]]
  $region49: #{bce_dice_loss.1} parent=0
    _
  %s5 = ssub.s32 1, %s3
  %s6 = scalar_select 0, %s5, %s3
  loop: start=0, step=1, limit=4
  $region2: #{bce_dice_loss.1} parent=0 // loop_pre_header
    _
  $region3: #{bce_dice_loss.1} parent=0 // loop_header
    %s8 = sphi 0, %s12
    %p9 = scmp.ge.s32.totalorder %s8, 4
    %s15 = sphi 0, %s27
    %s16 = sphi 0, %s23
    %s17 = sphi 0, %s15
    %s18 = sphi 0, %s16
    %s19 = sphi 0, %s17
    %s20 = sphi 0, %s18
    %s32 = sphi 0, %s34
    %s35 = sphi 0, %s32
    %s36 = sphi 0, %s35
    %s52 = sphi 0, %s36
    %s60 = sphi 0, %s62
    %s63 = sphi 0, %s60
    %s64 = sphi 0, %s63
    %s80 = sphi 0, %s64
    %s86 = sphi 0, %s88
    %s89 = sphi 0, %s86
    %s90 = sphi 0, %s89
    %s106 = sphi 0, %s90
  $region4: #{bce_dice_loss.1} parent=0 // loop_header_branch
    %11 = sbr.rel (%p9) target = $region8
  $region5: #{bce_dice_loss.1} parent=0 // loop_body
    %s13 = ssub.s32 %s8, 1
    %s14 = ssub.s32 %s8, 2
    %s21 = sadd.s32 1, %s16
    %p22 = scmp.ge.s32.totalorder %s21, 1
    %s23 = scalar_select %p22, 0, %s21
    %s24 = sadd.s32 1, %s15
    %s25 = scalar_select %p22, %s24, %s15
    %p26 = scmp.ge.s32.totalorder %s25, 2
    %s27 = scalar_select %p26, 0, %s25
    %s28 = ssub.s32 %s15, %s27
    %s29 = ssub.s32 %s16, %s23
    %s30 = sor.u32 %s28, %s29
    %p31 = scmp.eq.s32.totalorder %s30, 0
    %s33 = sadd.s32 %s32, 1
    %s34 = scalar_select %p31, %s32, %s33
    %p37 = pneg %p31
    %p38 = scmp.eq.s32.totalorder %s8, 1
    %p39 = por %p37, %p38
    %p40 = scmp.ne.s32.totalorder %s32, %s35
    %p41 = scmp.eq.s32.totalorder %s8, 0
    %p42 = por %p40, %p41
    %p43 = scmp.ne.s32.totalorder %s32, %s35
    %p44 = scmp.eq.s32.totalorder %s13, 1
    %p45 = por %p43, %p44
    %p46 = scmp.ne.s32.totalorder %s35, %s36
    %p47 = scmp.eq.s32.totalorder %s13, 0
    %p48 = por %p46, %p47
    %p49 = scmp.ne.s32.totalorder %s35, %s36
    %p50 = scmp.eq.s32.totalorder %s14, 1
    %p51 = por %p49, %p50
    %p53 = scmp.ne.s32.totalorder %s36, %s52
    %p54 = scmp.eq.s32.totalorder %s14, 0
    %p55 = por %p53, %p54
    %s56 = ssub.s32 %s15, %s27
    %s57 = ssub.s32 %s16, %s23
    %s58 = sor.u32 %s56, %s57
    %p59 = scmp.eq.s32.totalorder %s58, 0
    %s61 = sadd.s32 %s60, 1
    %s62 = scalar_select %p59, %s60, %s61
    %p65 = pneg %p59
    %p66 = scmp.eq.s32.totalorder %s8, 1
    %p67 = por %p65, %p66
    %p68 = scmp.ne.s32.totalorder %s60, %s63
    %p69 = scmp.eq.s32.totalorder %s8, 0
    %p70 = por %p68, %p69
    %p71 = scmp.ne.s32.totalorder %s60, %s63
    %p72 = scmp.eq.s32.totalorder %s13, 1
    %p73 = por %p71, %p72
    %p74 = scmp.ne.s32.totalorder %s63, %s64
    %p75 = scmp.eq.s32.totalorder %s13, 0
    %p76 = por %p74, %p75
    %p77 = scmp.ne.s32.totalorder %s63, %s64
    %p78 = scmp.eq.s32.totalorder %s14, 1
    %p79 = por %p77, %p78
    %p81 = scmp.ne.s32.totalorder %s64, %s80
    %p82 = scmp.eq.s32.totalorder %s14, 0
    %p83 = por %p81, %p82
    %s84 = ssub.s32 %s15, %s27
    %p85 = scmp.eq.s32.totalorder %s84, 0
    %s87 = sadd.s32 %s86, 1
    %s88 = scalar_select %p85, %s86, %s87
    %p91 = pneg %p85
    %p92 = scmp.eq.s32.totalorder %s8, 1
    %p93 = por %p91, %p92
    %p94 = scmp.ne.s32.totalorder %s86, %s89
    %p95 = scmp.eq.s32.totalorder %s8, 0
    %p96 = por %p94, %p95
    %p97 = scmp.ne.s32.totalorder %s86, %s89
    %p98 = scmp.eq.s32.totalorder %s13, 1
    %p99 = por %p97, %p98
    %p100 = scmp.ne.s32.totalorder %s89, %s90
    %p101 = scmp.eq.s32.totalorder %s13, 0
    %p102 = por %p100, %p101
    %p103 = scmp.ne.s32.totalorder %s89, %s90
    %p104 = scmp.eq.s32.totalorder %s14, 1
    %p105 = por %p103, %p104
    %p107 = scmp.ne.s32.totalorder %s90, %s106
    %p108 = scmp.eq.s32.totalorder %s14, 0
    %p109 = por %p107, %p108
    %p110 = scmp.le.s32.totalorder 1, %s8
    %p111 = scmp.lt.s32.totalorder %s8, 3
    %p112 = pnand %p110, %p111
    %p113 = pneg %p112
    // Predicated region
    $region9: #{bce_dice_loss.1} parent=5 // pred_check
      _
    $region10: #{bce_dice_loss.1} parent=5 // pred_check_branch
      %115 = sbr.rel (%p112) target = $region12
    $region11: #{bce_dice_loss.1} parent=5 // pred_region
      %s116 = ssub.s32 %s8, 1
    $region12: #{bce_dice_loss.1} parent=5 // pred_fallthru
      _
    %p117 = scmp.lt.s32.totalorder %s8, 2
    // Predicated region
    $region13: #{bce_dice_loss.1} parent=5 // pred_check
      %p118 = pneg %p117
    $region14: #{bce_dice_loss.1} parent=5 // pred_check_branch
      %120 = sbr.rel (%p118) target = $region16
    $region15: #{bce_dice_loss.1} parent=5 // pred_region
      // Predicated region
      $region17: #{bce_dice_loss.1} parent=15 // pred_check
        %p121 = pneg %p42
      $region18: #{bce_dice_loss.1} parent=15 // pred_check_branch
        %123 = sbr.rel (%p121) target = $region20
      $region19: #{bce_dice_loss.1} parent=15 // pred_region
        %p124 = scmp.lt.s32.totalorder %s15, 1
        %s125 = scalar_select %p124, %s15, 1
        %p126 = scmp.lt.s32.totalorder %s16, 0
        %s127 = scalar_select %p126, %s16, 0
        %s128 = sadd.s32 %s127, %s125
        %s129 = smul.addr %s128, 8
        %s130 = scalar_lea.vmem %s0, %s129
      $region20: #{bce_dice_loss.1} parent=15 // pred_fallthru
        _
      // Predicated region
      $region21: #{bce_dice_loss.1} parent=15 // pred_check
        %p131 = pneg %p70
      $region22: #{bce_dice_loss.1} parent=15 // pred_check_branch
        %133 = sbr.rel (%p131) target = $region24
      $region23: #{bce_dice_loss.1} parent=15 // pred_region
        %p134 = scmp.lt.s32.totalorder %s15, 1
        %s135 = scalar_select %p134, %s15, 1
        %p136 = scmp.lt.s32.totalorder %s16, 0
        %s137 = scalar_select %p136, %s16, 0
        %s138 = sadd.s32 %s137, %s135
        %s139 = smul.addr %s138, 8
        %s140 = scalar_lea.vmem %s1, %s139
      $region24: #{bce_dice_loss.1} parent=15 // pred_fallthru
        _
    $region16: #{bce_dice_loss.1} parent=5 // pred_fallthru
      _
    %p141 = scmp.le.s32.totalorder 1, %s8
    %p142 = scmp.lt.s32.totalorder %s8, 3
    %p143 = pnand %p141, %p142
    %p144 = pneg %p143
    // Predicated region
    $region25: #{bce_dice_loss.1} parent=5 // pred_check
      _
    $region26: #{bce_dice_loss.1} parent=5 // pred_check_branch
      %146 = sbr.rel (%p143) target = $region28
    $region27: #{bce_dice_loss.1} parent=5 // pred_region
      %s147 = ssub.s32 %s8, 1
      %p148 = scmp.lt.s32.totalorder %s17, 1
      %s149 = scalar_select %p148, %s17, 1
      %p150 = scmp.lt.s32.totalorder %s18, 0
      %s151 = scalar_select %p150, %s18, 0
      %s152 = sadd.s32 %s151, %s149
      %s153 = smul.addr %s152, 8
      %s154 = scalar_lea.vmem %s0, %s153
      %p155 = pneg %p48
      %p156 = pneg %p45
      %p157 = scmp.lt.s32.totalorder %s17, 1
      %s158 = scalar_select %p157, %s17, 1
      %p159 = scmp.lt.s32.totalorder %s18, 0
      %s160 = scalar_select %p159, %s18, 0
      %s161 = sadd.s32 %s160, %s158
      %s162 = smul.addr %s161, 8
      %s163 = scalar_lea.vmem %s1, %s162
      %p164 = pneg %p76
      %p165 = pneg %p73
      %p166 = pneg %p102
      %p167 = pneg %p99
      %p168 = scmp.lt.s32.totalorder %s17, 1
      %s169 = scalar_select %p168, %s17, 1
      %s170 = smul.addr %s169, 4
      %s171 = smul.addr %s170, 8
      %s172 = scalar_lea.vmem %s2, %s171
      %p173 = scmp.lt.s32.totalorder %s17, 1
      %s174 = scalar_select %p173, %s17, 1
      %p175 = scmp.lt.s32.totalorder %s18, 0
      %s176 = scalar_select %p175, %s18, 0
      %s177 = sadd.s32 %s176, %s174
      %s178 = smul.addr %s177, 8
      %s179 = scalar_lea.vmem %s0, %s178
      %p180 = scmp.lt.s32.totalorder %s17, 1
      %s181 = scalar_select %p180, %s17, 1
      %p182 = scmp.lt.s32.totalorder %s18, 0
      %s183 = scalar_select %p182, %s18, 0
      %s184 = sadd.s32 %s183, %s181
      %s185 = smul.addr %s184, 8
      %s186 = scalar_lea.vmem %s1, %s185
      %p187 = scmp.lt.s32.totalorder %s17, 1
      %s188 = scalar_select %p187, %s17, 1
      %s189 = smul.addr %s188, 4
      %s190 = smul.addr %s189, 8
      %s191 = scalar_lea.vmem %s2, %s190
      %p192 = scmp.eq.s32.totalorder %s18, 0
      // Predicated region
      $region29: #{bce_dice_loss.1} parent=27 // pred_check
        %p193 = pneg %p192
      $region30: #{bce_dice_loss.1} parent=27 // pred_check_branch
        %195 = sbr.rel (%p193) target = $region32
      $region31: #{bce_dice_loss.1} parent=27 // pred_region
        %196 = vst [vmem:[#allocation2] sm:$0xff] 0.0
        %197 = vst [vmem:[#allocation3] sm:$0xff] 0.0
        %198 = vst [vmem:[#allocation4] sm:$0xff] 0.0
        %199 = vst [vmem:[#allocation5] sm:$0xff] 0.0
      $region32: #{bce_dice_loss.1} parent=27 // pred_fallthru
        _
      %v200 = vld [vmem:[%s179] sm:$0xff]
      %v201 = vld [vmem:[%s186] sm:$0xff]
      %v202 = vlog2.pop %v200
      %v203 = vmul.f32 %v202, 0.6931472
      %v204 = vmax.f32 %v203, -100.0
      %v205 = vsub.f32 1.0, %v200
      %v206 = vlog2.pop %v205
      %v207 = vmul.f32 %v206, 0.6931472
      %v208 = vmax.f32 %v207, -100.0
      %v209 = vmul.f32 %v201, %v204
      %v210 = vsub.f32 1.0, %v201
      %v211 = vmul.f32 %v210, %v208
      %v212 = vadd.f32 %v209, %v211
      %v213 = vsub.f32 0.0, %v212
      %v214 = vmul.f32 %v200, %v201
      %v215 = vld [vmem:[#allocation2] sm:$0xff]
      %v216 = vadd.f32 %v215, %v213
      %217 = vst [vmem:[#allocation2] sm:$0xff] %v216
      %v218 = vld [vmem:[#allocation3] sm:$0xff]
      %v219 = vadd.f32 %v218, %v214
      %220 = vst [vmem:[#allocation3] sm:$0xff] %v219
      %v221 = vld [vmem:[#allocation4] sm:$0xff]
      %v222 = vadd.f32 %v221, %v200
      %223 = vst [vmem:[#allocation4] sm:$0xff] %v222
      %v224 = vld [vmem:[#allocation5] sm:$0xff]
      %v225 = vadd.f32 %v224, %v201
      %226 = vst [vmem:[#allocation5] sm:$0xff] %v225
      // Predicated region
      $region33: #{bce_dice_loss.1} parent=27 // pred_check
        %p227 = pneg %p192
      $region34: #{bce_dice_loss.1} parent=27 // pred_check_branch
        %229 = sbr.rel (%p227) target = $region36
      $region35: #{bce_dice_loss.1} parent=27 // pred_region
        %v230 = vld [vmem:[#allocation2] sm:$0xff]
        %231 = vst [vmem:[%s191] sm:$0xff] %v230
        %v232 = vld [vmem:[#allocation3] sm:$0xff]
        %s233 = scalar_lea.vmem %s191, 8
        %234 = vst [vmem:[%s233] sm:$0xff] %v232
        %v235 = vld [vmem:[#allocation4] sm:$0xff]
        %s236 = scalar_lea.vmem %s191, 16
        %237 = vst [vmem:[%s236] sm:$0xff] %v235
        %v238 = vld [vmem:[#allocation5] sm:$0xff]
        %s239 = scalar_lea.vmem %s191, 24
        %240 = vst [vmem:[%s239] sm:$0xff] %v238
      $region36: #{bce_dice_loss.1} parent=27 // pred_fallthru
        _
      %p241 = scmp.lt.s32.totalorder %s17, 1
      %s242 = scalar_select %p241, %s17, 1
      %s243 = smul.addr %s242, 4
      %s244 = smul.addr %s243, 8
      %s245 = scalar_lea.vmem %s2, %s244
      // Predicated region
      $region37: #{bce_dice_loss.1} parent=27 // pred_check
        %p246 = pneg %p99
      $region38: #{bce_dice_loss.1} parent=27 // pred_check_branch
        %248 = sbr.rel (%p246) target = $region40
      $region39: #{bce_dice_loss.1} parent=27 // pred_region
        _
      $region40: #{bce_dice_loss.1} parent=27 // pred_fallthru
        _
    $region28: #{bce_dice_loss.1} parent=5 // pred_fallthru
      _
    %p249 = scmp.le.s32.totalorder 2, %s8
    // Predicated region
    $region41: #{bce_dice_loss.1} parent=5 // pred_check
      %p250 = pneg %p249
    $region42: #{bce_dice_loss.1} parent=5 // pred_check_branch
      %252 = sbr.rel (%p250) target = $region44
    $region43: #{bce_dice_loss.1} parent=5 // pred_region
      %s253 = ssub.s32 %s8, 2
      // Predicated region
      $region45: #{bce_dice_loss.1} parent=43 // pred_check
        %p254 = pneg %p105
      $region46: #{bce_dice_loss.1} parent=43 // pred_check_branch
        %256 = sbr.rel (%p254) target = $region48
      $region47: #{bce_dice_loss.1} parent=43 // pred_region
        %p257 = scmp.lt.s32.totalorder %s19, 1
        %s258 = scalar_select %p257, %s19, 1
        %s259 = smul.addr %s258, 4
        %s260 = smul.addr %s259, 8
        %s261 = scalar_lea.vmem %s2, %s260
      $region48: #{bce_dice_loss.1} parent=43 // pred_fallthru
        _
    $region44: #{bce_dice_loss.1} parent=5 // pred_fallthru
      _
  $region6: #{bce_dice_loss.1} parent=0 // loop_footer
    %s12 = sadd.s32 1, %s8
  $region7: #{bce_dice_loss.1} parent=0 // loop_footer_branch
    %7 = sbr.rel target = $region3
  $region8: #{bce_dice_loss.1} parent=0 // loop_exit
    _

</llo_original>
